<compile_context>
chip_gen: v6e
topology: v6e:2x2x1
jax: 0.10.0
libtpu: 0.0.40
codegen_flags: <defaults>
</compile_context>

<pallas_src>
import functools

import jax
import jax.numpy as jnp
from jax.experimental import pallas as pl
from jax.experimental.pallas import tpu as pltpu

_MXU_ROWS_TARGET = 256        # fill v6e/v7x MXU rows (128 already suffices on v5e)
_T_CHUNK_CAP = 256            # bound the (TB, t_chunk, N_pad) f32 intermediate
_VMEM_STEP_BUDGET = 24 << 20  # headroom inside the 32 MiB default scoped VMEM


def _fused_cnn_kernel(x_ref, w_ref, b_ref, o_ref, xu_ref, *,
                      widths, L, t_chunk, n_chunks, H, Co, co_pad):
    """Fused multi-width conv + per-width time-max + bias + ReLU.

    x_ref : (TB, L_pad, H)   zero-padded input, L_pad = n_chunks*t_chunk + max_w - 1
    w_ref : (K, N_pad)       stacked filters, K = max_w*H, N_pad = n_w*co_pad
    b_ref : (1, N_pad)       stacked bias (zeros in padded lanes)
    o_ref : (TB, n_w*Co)     compacted output (matches the PyTorch concat)
    xu_ref: (TB, t_chunk, K) VMEM scratch holding the unfolded LHS of one chunk
    """
    max_w = max(widths)
    n_w = len(widths)

    # Taps per grouped lane store: one 128-lane-aligned slab when H divides 128.
    group = 128 // H if (H < 128 and 128 % H == 0) else 1

    running = [None] * n_w  # per-width (TB, co_pad) running max over time

    for c in range(n_chunks):
        t0 = c * t_chunk

        # Unfold this time chunk: xu[b, t, dw*H + h] = x[b, t0 + t + dw, h].
        # Grouped so most stores are unmasked and 128-lane aligned.
        for dw0 in range(0, max_w, group):
            g = min(group, max_w - dw0)
            if g == 1:
                slab = x_ref[:, t0 + dw0:t0 + dw0 + t_chunk, :]
            else:
                slab = jnp.concatenate(
                    [x_ref[:, t0 + dw0 + gi:t0 + dw0 + gi + t_chunk, :]
                     for gi in range(g)],
                    axis=-1)
            xu_ref[:, :, dw0 * H:(dw0 + g) * H] = slab

        # One MXU matmul for all widths: (TB, tc, K) x (K, N_pad), f32 accum.
        conv = jax.lax.dot_general(
            xu_ref[...], w_ref[...],
            dimension_numbers=(((2,), (0,)), ((), ())),
            preferred_element_type=jnp.float32)

        # Per-width running max over this chunk's *valid* time positions only,
        # so zero-padded time rows never leak into the max.
        for j, w in enumerate(widths):
            t_out = L - w + 1
            valid = min(t_chunk, t_out - t0)
            if valid <= 0:
                continue
            lo = j * co_pad
            pooled = jnp.max(conv[:, :valid, lo:lo + co_pad], axis=1)
            running[j] = pooled if running[j] is None else jnp.maximum(running[j], pooled)

    # Epilogue: bias + ReLU commute with the time-max -> (TB, Co) work per width.
    # Compact straight into the (TB, n_w*Co) output: 3 small masked stores
    # instead of a post-kernel slice+concat launch.
    for j in range(n_w):
        lo = j * co_pad
        o_ref[:, j * Co:(j + 1) * Co] = jnp.maximum(
            running[j][:, :Co] + b_ref[:, lo:lo + Co], 0.0)


def pack_cnn_text_params(weights, biases, widths, *, compute_dtype=jnp.float32):
    """One-time packing of per-width Conv2d filters into a single MXU matrix.

    weights[j]: (widths[j], H, Co); biases[j]: (1, Co).
    Returns w_stacked (K, n_w*co_pad) and b_stacked (1, n_w*co_pad); the narrower
    widths' extra taps and the lanes beyond Co are zero.
    Call ONCE at init (these are parameters), not per forward call.
    """
    max_w = max(widths)
    H = weights[0].shape[1]
    Co = weights[0].shape[-1]
    K = max_w * H
    co_pad = max(128, ((Co + 127) // 128) * 128)
    w_cols, b_cols = [], []
    for w_arr, b_arr, w in zip(weights, biases, widths):
        wp = jnp.zeros((max_w, H, co_pad), jnp.float32)
        wp = wp.at[:w, :, :Co].set(w_arr)
        w_cols.append(wp.reshape(K, co_pad))
        bp = jnp.zeros((1, co_pad), jnp.float32)
        bp = bp.at[:, :Co].set(b_arr)
        b_cols.append(bp)
    w_stacked = jnp.concatenate(w_cols, axis=1).astype(compute_dtype)  # (K, N_pad)
    b_stacked = jnp.concatenate(b_cols, axis=1)                        # (1, N_pad) f32
    return w_stacked, b_stacked


@functools.partial(jax.jit, static_argnames=("widths", "Co", "compute_dtype"))
def cnn_text_layer(x, w_stacked, b_stacked, *, widths, Co,
                   compute_dtype=jnp.float32):
    """CNNTextLayer forward as one Pallas kernel: x (B, L, H) -> (B, n_w*Co) f32."""
    B, L, H = x.shape
    n_w = len(widths)
    max_w, min_w = max(widths), min(widths)
    if L < max_w:
        raise ValueError(f"sequence length {L} must be >= max conv width {max_w}")
    T = L - min_w + 1                      # time extent of the widest per-width output
    K = max_w * H
    co_pad = w_stacked.shape[1] // n_w
    N_pad = n_w * co_pad
    N_out = n_w * Co
    itemsize = jnp.dtype(compute_dtype).itemsize

    # Time chunking keeps the (TB, t_chunk, N_pad) f32 matmul result bounded.
    t_chunk = min(T, _T_CHUNK_CAP)
    n_chunks = pl.cdiv(T, t_chunk)
    L_pad = n_chunks * t_chunk + max_w - 1  # every tap slice stays in-bounds

    def _lane(n):                           # lane-padded width (multiple of 128)
        return ((n + 127) // 128) * 128

    def _per_step_bytes(tb):                # rough VMEM footprint per grid step
        return (2 * tb * L_pad * _lane(H) * itemsize         # x block (double-buffered)
                + K * N_pad * itemsize + N_pad * 4           # resident weights + bias
                + tb * t_chunk * _lane(K) * itemsize         # xu scratch
                + tb * t_chunk * N_pad * 4                   # conv f32 intermediate
                + 2 * tb * _lane(N_out) * 4)                 # out block (double-buffered)

    # Batch tile: TB*T should fill the MXU rows (>=256 on v6e/v7x), keep >=2 grid
    # steps when B allows (v7x's two TensorCores), and fit the VMEM budget
    # (re-derived, so a tile sized for v5e/v6e's 128 MiB cannot spill on v7x).
    if B <= 8:
        TB = B
    else:
        tb = max(8, ((pl.cdiv(_MXU_ROWS_TARGET, T) + 7) // 8) * 8)
        tb_half = max(8, ((pl.cdiv(B, 2) + 7) // 8) * 8)     # cap: >= 2 grid steps
        tb = min(tb, tb_half)
        while tb > 8 and _per_step_bytes(tb) > _VMEM_STEP_BUDGET:
            tb -= 8
        TB = tb
    B_pad = pl.cdiv(B, TB) * TB
    grid = (B_pad // TB,)

    # Only per-call prep: zero-pad x along batch/time. Padded rows only ever meet
    # zero weight taps or time positions that are sliced away before the max.
    x_p = jnp.pad(x, ((0, B_pad - B), (0, L_pad - L), (0, 0))).astype(compute_dtype)

    kernel = functools.partial(
        _fused_cnn_kernel, widths=tuple(widths), L=L, t_chunk=t_chunk,
        n_chunks=n_chunks, H=H, Co=Co, co_pad=co_pad)

    cost = pl.CostEstimate(
        flops=2 * B * sum((L - w + 1) * w * H * Co for w in widths),
        transcendentals=0,
        bytes_accessed=(x_p.size * itemsize + w_stacked.size * itemsize
                        + b_stacked.size * 4 + B_pad * N_out * 4))

    out = pl.pallas_call(
        kernel,
        out_shape=jax.ShapeDtypeStruct((B_pad, N_out), jnp.float32),
        grid=grid,
        in_specs=[
            pl.BlockSpec((TB, L_pad, H), lambda i: (i, 0, 0)),
            pl.BlockSpec((K, N_pad), lambda i: (0, 0)),
            pl.BlockSpec((1, N_pad), lambda i: (0, 0)),
        ],
        out_specs=pl.BlockSpec((TB, N_out), lambda i: (i, 0)),
        scratch_shapes=[pltpu.VMEM((TB, t_chunk, K), compute_dtype)],
        compiler_params=pltpu.CompilerParams(
            dimension_semantics=("parallel",),
            vmem_limit_bytes=int(min(64 << 20,
                                     max(32 << 20, 2 * _per_step_bytes(TB))))),
        cost_estimate=cost,
    )(x_p, w_stacked, b_stacked)

    return out[:B] if B_pad != B else out


def cnn_text_layer_ref(x, weights, biases, widths):
    """Pure-JAX reference matching the PyTorch forward."""
    outs = []
    for w_arr, b_arr, width in zip(weights, biases, widths):
        T = x.shape[1] - width + 1
        xu = jnp.stack([x[:, dw:dw + T, :] for dw in range(width)], axis=2)
        s = jnp.einsum('btwh,whc->btc', xu, w_arr) + b_arr[None, :, :]
        outs.append(jnp.max(jax.nn.relu(s), axis=1))
    return jnp.concatenate(outs, axis=1)


if __name__ == "__main__":
    # Small shapes consistent with the module's forward:
    #   batch B=2, sequence length L=16, embedding dim n_in=H=32,
    #   widths=(3,4,5), filters(Co)=100 -> output (2, 300).
    B, L, H = 2, 16, 32
    widths = (3, 4, 5)
    Co = 100

    key = jax.random.PRNGKey(0)
    kx, *kws = jax.random.split(key, 1 + 2 * len(widths))

    x = jax.random.normal(kx, (B, L, H), dtype=jnp.float32)

    weights, biases = [], []
    for i, w in enumerate(widths):
        kw, kb = kws[2 * i], kws[2 * i + 1]
        # PyTorch Conv2d weight shape is (Co, 1, w, H); stored here as (w, H, Co).
        fan_in = float(w * H)
        weights.append(
            jax.random.normal(kw, (w, H, Co), dtype=jnp.float32) / jnp.sqrt(fan_in))
        biases.append(jax.random.normal(kb, (1, Co), dtype=jnp.float32) * 0.01)

    # One-time parameter packing (hoisted out of the per-call path).
    w_stacked, b_stacked = pack_cnn_text_params(weights, biases, widths)

    out = cnn_text_layer(x, w_stacked, b_stacked, widths=widths, Co=Co)
    out = jax.block_until_ready(out)

    ref = cnn_text_layer_ref(x, weights, biases, widths)
    assert out.shape == (B, len(widths) * Co), out.shape
    assert jnp.allclose(out, ref, atol=1e-5, rtol=1e-5), "mismatch vs reference"

    print("KERNEL_OK")
</pallas_src>

<mosaic_0001>
module attributes {stable_mosaic.version = 11 : i64} {
  func.func @_fused_cnn_kernel(%arg0: i32, %arg1: memref<2x18x32xf32, #tpu.memory_space<vmem>>, %arg2: memref<160x384xf32, #tpu.memory_space<vmem>>, %arg3: memref<1x384xf32, #tpu.memory_space<vmem>>, %arg4: memref<2x300xf32, #tpu.memory_space<vmem>>, %arg5: memref<2x14x160xf32, #tpu.memory_space<vmem>>) attributes {dimension_semantics = [#tpu.dimension_semantics<parallel>], iteration_bounds = array<i64: 1>, scalar_prefetch = 0 : i64, scratch_operands = 1 : i64, tpu.core_type = #tpu.core_type<tc>, window_params = [{transform_indices = @transform_0, window_bounds = array<i64: 2, 18, 32>}, {pipeline_mode = #tpu.pipeline_mode<synchronous>, transform_indices = @transform_1, window_bounds = array<i64: 160, 384>}, {pipeline_mode = #tpu.pipeline_mode<synchronous>, transform_indices = @transform_2, window_bounds = array<i64: 1, 384>}, {transform_indices = @transform_3, window_bounds = array<i64: 2, 300>}]} {
    %c0 = arith.constant 0 : index
    %c0_0 = arith.constant 0 : index
    %c0_1 = arith.constant 0 : index
    %0 = vector.load %arg1[%c0, %c0_0, %c0_1] : memref<2x18x32xf32, #tpu.memory_space<vmem>>, vector<2x14x32xf32>
    %c0_2 = arith.constant 0 : index
    %c1 = arith.constant 1 : index
    %c0_3 = arith.constant 0 : index
    %1 = vector.load %arg1[%c0_2, %c1, %c0_3] : memref<2x18x32xf32, #tpu.memory_space<vmem>>, vector<2x14x32xf32>
    %c0_4 = arith.constant 0 : index
    %c2 = arith.constant 2 : index
    %c0_5 = arith.constant 0 : index
    %2 = vector.load %arg1[%c0_4, %c2, %c0_5] : memref<2x18x32xf32, #tpu.memory_space<vmem>>, vector<2x14x32xf32>
    %c0_6 = arith.constant 0 : index
    %c3 = arith.constant 3 : index
    %c0_7 = arith.constant 0 : index
    %3 = vector.load %arg1[%c0_6, %c3, %c0_7] : memref<2x18x32xf32, #tpu.memory_space<vmem>>, vector<2x14x32xf32>
    %4 = tpu.concatenate %0, %1, %2, %3 in 2 : vector<2x14x32xf32>, vector<2x14x32xf32>, vector<2x14x32xf32>, vector<2x14x32xf32> -> vector<2x14x128xf32>
    %c0_8 = arith.constant 0 : index
    %c0_9 = arith.constant 0 : index
    %c0_10 = arith.constant 0 : index
    %5 = vector.load %arg5[%c0_8, %c0_9, %c0_10] : memref<2x14x160xf32, #tpu.memory_space<vmem>>, vector<2x14x128xf32>
    tpu.vector_store %arg5[%c0_8, %c0_9, %c0_10], %4 {strides = array<i32>} : memref<2x14x160xf32, #tpu.memory_space<vmem>>, vector<2x14x128xf32>,
    %c0_11 = arith.constant 0 : index
    %c4 = arith.constant 4 : index
    %c0_12 = arith.constant 0 : index
    %6 = vector.load %arg1[%c0_11, %c4, %c0_12] : memref<2x18x32xf32, #tpu.memory_space<vmem>>, vector<2x14x32xf32>
    %c0_13 = arith.constant 0 : index
    %c0_14 = arith.constant 0 : index
    %c128 = arith.constant 128 : index
    %7 = vector.load %arg5[%c0_13, %c0_14, %c128] : memref<2x14x160xf32, #tpu.memory_space<vmem>>, vector<2x14x32xf32>
    tpu.vector_store %arg5[%c0_13, %c0_14, %c128], %6 {strides = array<i32>} : memref<2x14x160xf32, #tpu.memory_space<vmem>>, vector<2x14x32xf32>,
    %c0_15 = arith.constant 0 : index
    %c0_16 = arith.constant 0 : index
    %c0_17 = arith.constant 0 : index
    %8 = vector.load %arg5[%c0_15, %c0_16, %c0_17] : memref<2x14x160xf32, #tpu.memory_space<vmem>>, vector<2x14x160xf32>
    %c0_18 = arith.constant 0 : index
    %c0_19 = arith.constant 0 : index
    %9 = vector.load %arg2[%c0_18, %c0_19] : memref<160x384xf32, #tpu.memory_space<vmem>>, vector<160x384xf32>
    %cst = arith.constant dense<0.000000e+00> : vector<2x14x384xf32>
    %10 = tpu.matmul %8, %9, %cst {dimension_numbers = #tpu.dot_dimension_numbers<[2], [0], [0, 1], [1], [0, 0, 0, 1, 1, 1], [], []>} : vector<2x14x160xf32>, vector<160x384xf32>, vector<2x14x384xf32> -> vector<2x14x384xf32>
    %11 = vector.extract_strided_slice %10 {offsets = [0, 0, 0], sizes = [2, 14, 128], strides = [1, 1, 1]} : vector<2x14x384xf32> to vector<2x14x128xf32>
    %cst_20 = arith.constant dense<0xFF800000> : vector<2x128xf32>
    %12 = vector.multi_reduction <maximumf>, %11, %cst_20 [1] : vector<2x14x128xf32> to vector<2x128xf32>
    %13 = vector.extract_strided_slice %10 {offsets = [0, 0, 128], sizes = [2, 13, 128], strides = [1, 1, 1]} : vector<2x14x384xf32> to vector<2x13x128xf32>
    %cst_21 = arith.constant dense<0xFF800000> : vector<2x128xf32>
    %14 = vector.multi_reduction <maximumf>, %13, %cst_21 [1] : vector<2x13x128xf32> to vector<2x128xf32>
    %15 = vector.extract_strided_slice %10 {offsets = [0, 0, 256], sizes = [2, 12, 128], strides = [1, 1, 1]} : vector<2x14x384xf32> to vector<2x12x128xf32>
    %cst_22 = arith.constant dense<0xFF800000> : vector<2x128xf32>
    %16 = vector.multi_reduction <maximumf>, %15, %cst_22 [1] : vector<2x12x128xf32> to vector<2x128xf32>
    %17 = vector.extract_strided_slice %12 {offsets = [0, 0], sizes = [2, 100], strides = [1, 1]} : vector<2x128xf32> to vector<2x100xf32>
    %c0_23 = arith.constant 0 : index
    %c0_24 = arith.constant 0 : index
    %18 = vector.load %arg3[%c0_23, %c0_24] : memref<1x384xf32, #tpu.memory_space<vmem>>, vector<1x100xf32>
    %19 = vector.broadcast %18 : vector<1x100xf32> to vector<2x100xf32>
    %20 = arith.addf %17, %19 : vector<2x100xf32>
    %cst_25 = arith.constant 0.000000e+00 : f32
    %21 = vector.broadcast %cst_25 : f32 to vector<2x100xf32>
    %22 = arith.maximumf %20, %21 : vector<2x100xf32>
    %c0_26 = arith.constant 0 : index
    %c0_27 = arith.constant 0 : index
    %23 = vector.load %arg4[%c0_26, %c0_27] : memref<2x300xf32, #tpu.memory_space<vmem>>, vector<2x100xf32>
    tpu.vector_store %arg4[%c0_26, %c0_27], %22 {strides = array<i32>} : memref<2x300xf32, #tpu.memory_space<vmem>>, vector<2x100xf32>,
    %24 = vector.extract_strided_slice %14 {offsets = [0, 0], sizes = [2, 100], strides = [1, 1]} : vector<2x128xf32> to vector<2x100xf32>
    %c0_28 = arith.constant 0 : index
    %c128_29 = arith.constant 128 : index
    %25 = vector.load %arg3[%c0_28, %c128_29] : memref<1x384xf32, #tpu.memory_space<vmem>>, vector<1x100xf32>
    %26 = vector.broadcast %25 : vector<1x100xf32> to vector<2x100xf32>
    %27 = arith.addf %24, %26 : vector<2x100xf32>
    %cst_30 = arith.constant 0.000000e+00 : f32
    %28 = vector.broadcast %cst_30 : f32 to vector<2x100xf32>
    %29 = arith.maximumf %27, %28 : vector<2x100xf32>
    %c0_31 = arith.constant 0 : index
    %c100 = arith.constant 100 : index
    %30 = vector.load %arg4[%c0_31, %c100] : memref<2x300xf32, #tpu.memory_space<vmem>>, vector<2x100xf32>
    tpu.vector_store %arg4[%c0_31, %c100], %29 {strides = array<i32>} : memref<2x300xf32, #tpu.memory_space<vmem>>, vector<2x100xf32>,
    %31 = vector.extract_strided_slice %16 {offsets = [0, 0], sizes = [2, 100], strides = [1, 1]} : vector<2x128xf32> to vector<2x100xf32>
    %c0_32 = arith.constant 0 : index
    %c256 = arith.constant 256 : index
    %32 = vector.load %arg3[%c0_32, %c256] : memref<1x384xf32, #tpu.memory_space<vmem>>, vector<1x100xf32>
    %33 = vector.broadcast %32 : vector<1x100xf32> to vector<2x100xf32>
    %34 = arith.addf %31, %33 : vector<2x100xf32>
    %cst_33 = arith.constant 0.000000e+00 : f32
    %35 = vector.broadcast %cst_33 : f32 to vector<2x100xf32>
    %36 = arith.maximumf %34, %35 : vector<2x100xf32>
    %c0_34 = arith.constant 0 : index
    %c200 = arith.constant 200 : index
    %37 = vector.load %arg4[%c0_34, %c200] : memref<2x300xf32, #tpu.memory_space<vmem>>, vector<2x100xf32>
    tpu.vector_store %arg4[%c0_34, %c200], %36 {strides = array<i32>} : memref<2x300xf32, #tpu.memory_space<vmem>>, vector<2x100xf32>,
    return
  }
  func.func @transform_0(%arg0: i32) -> (i32, i32, i32) {
    %c0_i32 = arith.constant 0 : i32
    %c0_i32_0 = arith.constant 0 : i32
    %c0_i32_1 = arith.constant 0 : i32
    return %arg0, %c0_i32, %c0_i32_0 : i32, i32, i32
  }
  func.func @transform_1(%arg0: i32) -> (i32, i32) {
    %c0_i32 = arith.constant 0 : i32
    %c0_i32_0 = arith.constant 0 : i32
    %c0_i32_1 = arith.constant 0 : i32
    return %c0_i32, %c0_i32_0 : i32, i32
  }
  func.func @transform_2(%arg0: i32) -> (i32, i32) {
    %c0_i32 = arith.constant 0 : i32
    %c0_i32_0 = arith.constant 0 : i32
    %c0_i32_1 = arith.constant 0 : i32
    return %c0_i32, %c0_i32_0 : i32, i32
  }
  func.func @transform_3(%arg0: i32) -> (i32, i32) {
    %c0_i32 = arith.constant 0 : i32
    %c0_i32_0 = arith.constant 0 : i32
    return %arg0, %c0_i32 : i32, i32
  }
}

</mosaic_0001>

<llo_original>
// kernel: cnn_text_layer.1
$region0: #{cnn_text_layer.1}
  #allocation0 [shape = 'u32[]', space=smem, size = 0x4, offset = 0x4, fixed_abs, tag = 'smem constant byte address 0x4 - core index']
  #allocation1 [shape = 'u32[144,128]{1,0:T(1,128)}', space=vmem, size = 0x12000, scoped, tag = 'internal scratch']
  #allocation2 [shape = 'f32[2,14,160]{2,1,0:T(8,128)}', space=vmem, size = 0x8000, scoped, tag = 'scratch operand']
  %s0 = inlined_call_operand.vmem [shape: f32[2,18,32], index: 0, kind: input, shape index: {}]
  %s1 = inlined_call_operand.hbm [shape: f32[160,384], index: 1, kind: input, shape index: {}]
  %s2 = inlined_call_operand.vmem [shape: f32[1,384], index: 2, kind: input, shape index: {}]
  %s3 = inlined_call_operand.hbm [shape: f32[2,300], index: 3, kind: output, shape index: {}]
  %s4 = sld [smem:[#allocation0]]
  $region26: #{cnn_text_layer.1} parent=0
    _
  %s6 = ssub.s32 1, %s4
  %s7 = scalar_select 0, %s6, %s4
  $region1: #{cnn_text_layer.1} parent=0
    #allocation3 [shape = 'u8[245760]{0}', space=vmem, size = 0x3c000, scoped, tag = 'input window, operand 1, single buffered']
    #allocation4 [shape = 's32[1]{0}', space=sflag, size = 0x4, scoped, tag = 'scoped memory for cnn_text_layer.1']
    #allocation5 [shape = 's32[1]{0}', space=sflag, size = 0x4, scoped, tag = 'scoped memory for cnn_text_layer.1']
    #allocation6 [shape = 'u8[3072]{0}', space=vmem, size = 0xc00, scoped, tag = 'output window, operand 0, single buffered']
    %8 = vsyncpa [#allocation4], 0
    %9 = vsyncpa [#allocation5], 0
    // Predicated region
    $region2: #{cnn_text_layer.1} parent=1 // pred_check
      _
    $region3: #{cnn_text_layer.1} parent=1 // pred_check_branch
      %11 = sbr.rel (0) target = $region5
    $region4: #{cnn_text_layer.1} parent=1 // pred_region
      _
    $region5: #{cnn_text_layer.1} parent=1 // pred_fallthru
      _
    // Predicated region
    $region6: #{cnn_text_layer.1} parent=1 // pred_check
      _
    $region7: #{cnn_text_layer.1} parent=1 // pred_check_branch
      %13 = sbr.rel (0) target = $region9
    $region8: #{cnn_text_layer.1} parent=1 // pred_region
      %s15 = ssub.s32 7680, 7680
      %16 = vsyncadd [#allocation4], %s15
      %s17 = sshll.u32 [#allocation3], 4
      %s18 = int_to_ptr.vmem [resolvable:$true] %s17
      %23 = dma.hbm_to_vmem [thread:$0]  %s1, 7680, %s18, [#allocation4], 384, 384, 24
    $region9: #{cnn_text_layer.1} parent=1 // pred_fallthru
      _
    // Predicated region
    $region10: #{cnn_text_layer.1} parent=1 // pred_check
      _
    $region11: #{cnn_text_layer.1} parent=1 // pred_check_branch
      %25 = sbr.rel (0) target = $region13
    $region12: #{cnn_text_layer.1} parent=1 // pred_region
      _
    $region13: #{cnn_text_layer.1} parent=1 // pred_fallthru
      _
    // Predicated region
    $region14: #{cnn_text_layer.1} parent=1 // pred_check
      _
    $region15: #{cnn_text_layer.1} parent=1 // pred_check_branch
      %27 = sbr.rel (0) target = $region17
    $region16: #{cnn_text_layer.1} parent=1 // pred_region
      %28 = dma.done [#allocation4], 7680
    $region17: #{cnn_text_layer.1} parent=1 // pred_fallthru
      _
    %v29 = vld [vmem:[%s0] sm:$0xff]
    %v30 = vld [vmem:[%s0 + $0x8] sm:$0x3f]
    %v31 = vld [vmem:[%s0 + $0x18] sm:$0xff]
    %v32 = vld [vmem:[%s0 + $0x20] sm:$0x3f]
    %v33 = vld [vmem:[%s0 + $0x1] sm:$0xff]
    %v34 = vld [vmem:[%s0 + $0x9] sm:$0x3f]
    %v35 = vld [vmem:[%s0 + $0x19] sm:$0xff]
    %v36 = vld [vmem:[%s0 + $0x21] sm:$0x3f]
    %v37 = vld [vmem:[%s0 + $0x2] sm:$0xff]
    %v38 = vld [vmem:[%s0 + $0xa] sm:$0x3f]
    %v39 = vld [vmem:[%s0 + $0x1a] sm:$0xff]
    %v40 = vld [vmem:[%s0 + $0x22] sm:$0x3f]
    %v41 = vld [vmem:[%s0 + $0x3] sm:$0xff]
    %v42 = vld [vmem:[%s0 + $0xb] sm:$0x3f]
    %v43 = vld [vmem:[%s0 + $0x1b] sm:$0xff]
    %v44 = vld [vmem:[%s0 + $0x23] sm:$0x3f]
    %49 = vrot.lane.b32.xlu0 %v33, 32
    %v50 = vpop.permute.xlu0 %49
    %51 = vrot.lane.b32.xlu0 %v34, 32
    %v52 = vpop.permute.xlu0 %51
    %53 = vrot.lane.b32.xlu0 %v35, 32
    %v54 = vpop.permute.xlu0 %53
    %55 = vrot.lane.b32.xlu0 %v36, 32
    %v56 = vpop.permute.xlu0 %55
    %65 = vrot.lane.b32.xlu0 %v37, 64
    %v66 = vpop.permute.xlu0 %65
    %67 = vrot.lane.b32.xlu0 %v38, 64
    %v68 = vpop.permute.xlu0 %67
    %69 = vrot.lane.b32.xlu0 %v39, 64
    %v70 = vpop.permute.xlu0 %69
    %71 = vrot.lane.b32.xlu0 %v40, 64
    %v72 = vpop.permute.xlu0 %71
    %81 = vrot.lane.b32.xlu0 %v41, 96
    %v82 = vpop.permute.xlu0 %81
    %83 = vrot.lane.b32.xlu0 %v42, 96
    %v84 = vpop.permute.xlu0 %83
    %85 = vrot.lane.b32.xlu0 %v43, 96
    %v86 = vpop.permute.xlu0 %85
    %87 = vrot.lane.b32.xlu0 %v44, 96
    %v88 = vpop.permute.xlu0 %87
    %vm93 = vcmask 261120
    %v94 = vsel %vm93, %v29, %v50
    %v95 = vsel %vm93, %v30, %v52
    %v96 = vsel %vm93, %v31, %v54
    %v97 = vsel %vm93, %v32, %v56
    %vm98 = vcmask 523264
    %v99 = vsel %vm98, %v94, %v66
    %v100 = vsel %vm98, %v95, %v68
    %v101 = vsel %vm98, %v96, %v70
    %v102 = vsel %vm98, %v97, %v72
    %vm103 = vcmask 785408
    %v104 = vsel %vm103, %v99, %v82
    %v105 = vsel %vm103, %v100, %v84
    %v106 = vsel %vm103, %v101, %v86
    %v107 = vsel %vm103, %v102, %v88
    %108 = vst [vmem:[#allocation2] sm:$0xff] %v104
    %109 = vst [vmem:[#allocation2 + $0x10] sm:$0x3f] %v105
    %110 = vst [vmem:[#allocation2 + $0x20] sm:$0xff] %v106
    %111 = vst [vmem:[#allocation2 + $0x30] sm:$0x3f] %v107
    %v112 = vld [vmem:[%s0 + $0x4] sm:$0xff]
    %v113 = vld [vmem:[%s0 + $0xc] sm:$0x3f]
    %v114 = vld [vmem:[%s0 + $0x1c] sm:$0xff]
    %v115 = vld [vmem:[%s0 + $0x24] sm:$0x3f]
    %116 = vst.msk [vmem:[#allocation2 + $0x8] sm:$0xff] %vm93, %v112
    %vm117 = vcmask 259072
    %118 = vst.msk [vmem:[#allocation2 + $0x18] sm:$0x3f] %vm117, %v113
    %119 = vst.msk [vmem:[#allocation2 + $0x28] sm:$0xff] %vm93, %v114
    %120 = vst.msk [vmem:[#allocation2 + $0x38] sm:$0x3f] %vm117, %v115
    %v121 = vld [vmem:[#allocation2] sm:$0xff]
    %v122 = vld [vmem:[#allocation2 + $0x8] sm:$0xff]
    %v123 = vld [vmem:[#allocation2 + $0x10] sm:$0x3f]
    %v124 = vld [vmem:[#allocation2 + $0x18] sm:$0x3f]
    %v125 = vld [vmem:[#allocation2 + $0x20] sm:$0xff]
    %v126 = vld [vmem:[#allocation2 + $0x28] sm:$0xff]
    %v127 = vld [vmem:[#allocation2 + $0x30] sm:$0x3f]
    %v128 = vld [vmem:[#allocation2 + $0x38] sm:$0x3f]
    %v129 = vld [vmem:[#allocation3] sm:$0xff]
    %v130 = vld [vmem:[#allocation3 + $0x8] sm:$0xff]
    %v131 = vld [vmem:[#allocation3 + $0x10] sm:$0xff]
    %v132 = vld [vmem:[#allocation3 + $0x18] sm:$0xff]
    %v133 = vld [vmem:[#allocation3 + $0x20] sm:$0xff]
    %v134 = vld [vmem:[#allocation3 + $0x28] sm:$0xff]
    %v135 = vld [vmem:[#allocation3 + $0x30] sm:$0xff]
    %v136 = vld [vmem:[#allocation3 + $0x38] sm:$0xff]
    %v137 = vld [vmem:[#allocation3 + $0x40] sm:$0xff]
    %v138 = vld [vmem:[#allocation3 + $0x48] sm:$0xff]
    %v139 = vld [vmem:[#allocation3 + $0x50] sm:$0xff]
    %v140 = vld [vmem:[#allocation3 + $0x58] sm:$0xff]
    %v141 = vld [vmem:[#allocation3 + $0x60] sm:$0xff]
    %v142 = vld [vmem:[#allocation3 + $0x68] sm:$0xff]
    %v143 = vld [vmem:[#allocation3 + $0x70] sm:$0xff]
    %v144 = vld [vmem:[#allocation3 + $0x78] sm:$0xff]
    %v145 = vld [vmem:[#allocation3 + $0x80] sm:$0xff]
    %v146 = vld [vmem:[#allocation3 + $0x88] sm:$0xff]
    %v147 = vld [vmem:[#allocation3 + $0x90] sm:$0xff]
    %v148 = vld [vmem:[#allocation3 + $0x98] sm:$0xff]
    %v149 = vld [vmem:[#allocation3 + $0xa0] sm:$0xff]
    %v150 = vld [vmem:[#allocation3 + $0xa8] sm:$0xff]
    %v151 = vld [vmem:[#allocation3 + $0xb0] sm:$0xff]
    %v152 = vld [vmem:[#allocation3 + $0xb8] sm:$0xff]
    %v153 = vld [vmem:[#allocation3 + $0xc0] sm:$0xff]
    %v154 = vld [vmem:[#allocation3 + $0xc8] sm:$0xff]
    %v155 = vld [vmem:[#allocation3 + $0xd0] sm:$0xff]
    %v156 = vld [vmem:[#allocation3 + $0xd8] sm:$0xff]
    %v157 = vld [vmem:[#allocation3 + $0xe0] sm:$0xff]
    %v158 = vld [vmem:[#allocation3 + $0xe8] sm:$0xff]
    %v159 = vld [vmem:[#allocation3 + $0xf0] sm:$0xff]
    %v160 = vld [vmem:[#allocation3 + $0xf8] sm:$0xff]
    %v161 = vld [vmem:[#allocation3 + $0x100] sm:$0xff]
    %v162 = vld [vmem:[#allocation3 + $0x108] sm:$0xff]
    %v163 = vld [vmem:[#allocation3 + $0x110] sm:$0xff]
    %v164 = vld [vmem:[#allocation3 + $0x118] sm:$0xff]
    %v165 = vld [vmem:[#allocation3 + $0x120] sm:$0xff]
    %v166 = vld [vmem:[#allocation3 + $0x128] sm:$0xff]
    %v167 = vld [vmem:[#allocation3 + $0x130] sm:$0xff]
    %v168 = vld [vmem:[#allocation3 + $0x138] sm:$0xff]
    %v169 = vld [vmem:[#allocation3 + $0x140] sm:$0xff]
    %v170 = vld [vmem:[#allocation3 + $0x148] sm:$0xff]
    %v171 = vld [vmem:[#allocation3 + $0x150] sm:$0xff]
    %v172 = vld [vmem:[#allocation3 + $0x158] sm:$0xff]
    %v173 = vld [vmem:[#allocation3 + $0x160] sm:$0xff]
    %v174 = vld [vmem:[#allocation3 + $0x168] sm:$0xff]
    %v175 = vld [vmem:[#allocation3 + $0x170] sm:$0xff]
    %v176 = vld [vmem:[#allocation3 + $0x178] sm:$0xff]
    %v177 = vld [vmem:[#allocation3 + $0x180] sm:$0xff]
    %v178 = vld [vmem:[#allocation3 + $0x188] sm:$0xff]
    %v179 = vld [vmem:[#allocation3 + $0x190] sm:$0xff]
    %v180 = vld [vmem:[#allocation3 + $0x198] sm:$0xff]
    %v181 = vld [vmem:[#allocation3 + $0x1a0] sm:$0xff]
    %v182 = vld [vmem:[#allocation3 + $0x1a8] sm:$0xff]
    %v183 = vld [vmem:[#allocation3 + $0x1b0] sm:$0xff]
    %v184 = vld [vmem:[#allocation3 + $0x1b8] sm:$0xff]
    %v185 = vld [vmem:[#allocation3 + $0x1c0] sm:$0xff]
    %v186 = vld [vmem:[#allocation3 + $0x1c8] sm:$0xff]
    %v187 = vld [vmem:[#allocation3 + $0x1d0] sm:$0xff]
    %v188 = vld [vmem:[#allocation3 + $0x1d8] sm:$0xff]
    %v197 = vcombine.low %v121, %v122
    %v198 = vcombine.high %v121, %v122
    %v200 = vunpack.c.l.s4 1983009808
    %v201 = vunpack.c.0.s8 %v200
    %v202 = vlaneseq
    %v203 = vshrl.u32 %v202, 7
    %v204 = vsub.s32 %v201, %v203
    %v205 = vrot.slane %v197, %v204
    %v207 = vunpack.c.l.s4 1983009808
    %v208 = vunpack.c.0.s8 %v207
    %v209 = vlaneseq
    %v210 = vshrl.u32 %v209, 7
    %v211 = vsub.s32 %v208, %v210
    %v212 = vrot.slane %v198, %v211
    %v213 = vcombine.high %v205, %v205
    %v214 = vcombine.high %v212, %v212
    %v215 = vcombine.low %v123, %v124
    %v216 = vcombine.high %v123, %v124
    %v218 = vunpack.c.l.s4 1983009808
    %v219 = vunpack.c.0.s8 %v218
    %v220 = vlaneseq
    %v221 = vshrl.u32 %v220, 7
    %v222 = vsub.s32 %v219, %v221
    %v223 = vrot.slane %v215, %v222
    %v225 = vunpack.c.l.s4 1983009808
    %v226 = vunpack.c.0.s8 %v225
    %v227 = vlaneseq
    %v228 = vshrl.u32 %v227, 7
    %v229 = vsub.s32 %v226, %v228
    %v230 = vrot.slane %v216, %v229
    %v231 = vcombine.high %v223, %v223
    %v232 = vcombine.low %v125, %v126
    %v233 = vcombine.high %v125, %v126
    %v235 = vunpack.c.l.s4 1983009808
    %v236 = vunpack.c.0.s8 %v235
    %v237 = vlaneseq
    %v238 = vshrl.u32 %v237, 7
    %v239 = vsub.s32 %v236, %v238
    %v240 = vrot.slane %v232, %v239
    %v242 = vunpack.c.l.s4 1983009808
    %v243 = vunpack.c.0.s8 %v242
    %v244 = vlaneseq
    %v245 = vshrl.u32 %v244, 7
    %v246 = vsub.s32 %v243, %v245
    %v247 = vrot.slane %v233, %v246
    %v248 = vcombine.high %v240, %v240
    %v249 = vcombine.high %v247, %v247
    %v250 = vcombine.low %v127, %v128
    %v251 = vcombine.high %v127, %v128
    %v253 = vunpack.c.l.s4 1983009808
    %v254 = vunpack.c.0.s8 %v253
    %v255 = vlaneseq
    %v256 = vshrl.u32 %v255, 7
    %v257 = vsub.s32 %v254, %v256
    %v258 = vrot.slane %v250, %v257
    %v260 = vunpack.c.l.s4 1983009808
    %v261 = vunpack.c.0.s8 %v260
    %v262 = vlaneseq
    %v263 = vshrl.u32 %v262, 7
    %v264 = vsub.s32 %v261, %v263
    %v265 = vrot.slane %v251, %v264
    %v266 = vcombine.high %v258, %v258
    %v267 = vcombine.low %v205, %v213
    %v268 = vcombine.low %v212, %v214
    %v270 = vunpack.c.l.s4 1983009808
    %v271 = vunpack.c.0.s8 %v270
    %v272 = vlaneseq
    %v273 = vshrl.u32 %v272, 7
    %v274 = vsub.s32 %v271, %v273
    %v275 = vrot.slane %v267, %v274
    %v277 = vunpack.c.l.s4 1983009808
    %v278 = vunpack.c.0.s8 %v277
    %v279 = vlaneseq
    %v280 = vshrl.u32 %v279, 7
    %v281 = vsub.s32 %v278, %v280
    %v282 = vrot.slane %v268, %v281
    %v283 = vcombine.low %v275, %v282
    %v284 = vcombine.high %v275, %v282
    %v285 = vcombine.low %v223, %v231
    %v286 = vcombine.low %v230, %v240
    %v288 = vunpack.c.l.s4 1983009808
    %v289 = vunpack.c.0.s8 %v288
    %v290 = vlaneseq
    %v291 = vshrl.u32 %v290, 7
    %v292 = vsub.s32 %v289, %v291
    %v293 = vrot.slane %v285, %v292
    %v295 = vunpack.c.l.s4 1983009808
    %v296 = vunpack.c.0.s8 %v295
    %v297 = vlaneseq
    %v298 = vshrl.u32 %v297, 7
    %v299 = vsub.s32 %v296, %v298
    %v300 = vrot.slane %v286, %v299
    %v301 = vcombine.low %v293, %v300
    %v302 = vcombine.high %v293, %v300
    %v303 = vcombine.low %v248, %v247
    %v304 = vcombine.low %v249, %v258
    %v306 = vunpack.c.l.s4 1983009808
    %v307 = vunpack.c.0.s8 %v306
    %v308 = vlaneseq
    %v309 = vshrl.u32 %v308, 7
    %v310 = vsub.s32 %v307, %v309
    %v311 = vrot.slane %v303, %v310
    %v313 = vunpack.c.l.s4 1983009808
    %v314 = vunpack.c.0.s8 %v313
    %v315 = vlaneseq
    %v316 = vshrl.u32 %v315, 7
    %v317 = vsub.s32 %v314, %v316
    %v318 = vrot.slane %v304, %v317
    %v319 = vcombine.low %v311, %v318
    %v320 = vcombine.high %v311, %v318
    %v321 = vcombine.low %v266, %v265
    %v323 = vunpack.c.l.s4 1983009808
    %v324 = vunpack.c.0.s8 %v323
    %v325 = vlaneseq
    %v326 = vshrl.u32 %v325, 7
    %v327 = vsub.s32 %v324, %v326
    %v328 = vrot.slane %v321, %v327
    %v329 = vcombine.high %v328, %v328
    %v334 = vsel %vm93, %v284, 0
    %v336 = vsel %vm93, %v302, 0
    %v338 = vsel %vm93, %v320, 0
    %v340 = vsel %vm93, %v329, 0
    %342 = vmatprep.subr.mxu0 %v175
    %343 = vmatpush1.msra.mxu0 %v174
    %344 = vmatprep.subr.mxu0 %v172
    %345 = vmatpush1.msra.mxu0 %v171
    %346 = vmatprep.subr.mxu0 %v169
    %347 = vmatpush1.msra.mxu0 %v168
    %348 = vmatprep.subr.mxu0 %v166
    %349 = vmatpush1.msra.mxu0 %v165
    %350 = vmatprep.subr.mxu0 %v163
    %351 = vmatpush1.msra.mxu0 %v162
    %352 = vmatprep.subr.mxu0 %v160
    %353 = vmatpush1.msra.mxu0 %v159
    %354 = vmatprep.subr.mxu0 %v157
    %355 = vmatpush1.msra.mxu0 %v156
    %356 = vmatprep.subr.mxu0 %v154
    %357 = vmatpush1.msra.mxu0 %v153
    %358 = vmatprep.subr.mxu0 %v151
    %359 = vmatpush1.msra.mxu0 %v150
    %360 = vmatprep.subr.mxu0 %v148
    %361 = vmatpush1.msra.mxu0 %v147
    %362 = vmatprep.subr.mxu0 %v145
    %363 = vmatpush1.msra.mxu0 %v144
    %364 = vmatprep.subr.mxu0 %v142
    %365 = vmatpush1.msra.mxu0 %v141
    %366 = vmatprep.subr.mxu0 %v139
    %367 = vmatpush1.msra.mxu0 %v138
    %368 = vmatprep.subr.mxu0 %v136
    %369 = vmatpush1.msra.mxu0 %v135
    %370 = vmatprep.subr.mxu0 %v133
    %371 = vmatpush1.msra.mxu0 %v132
    %372 = vmatprep.subr.mxu0 %v130
    %373 = vmatpush1.msra.mxu0 %v129
    %374 = vmatprep.subr.mxu0 0.0
    %375 = vmatpush2.msra.mxu0 0.0
    %376 = vmatprep.subr.mxu0 0.0
    %377 = vmatpush2.msra.mxu0 0.0
    %378 = vmatprep.subr.mxu0 0.0
    %379 = vmatpush2.msra.mxu0 0.0
    %380 = vmatprep.subr.mxu0 0.0
    %381 = vmatpush2.msra.mxu0 0.0
    %382 = vmatprep.subr.mxu0 0.0
    %383 = vmatpush2.msra.mxu0 0.0
    %384 = vmatprep.subr.mxu0 0.0
    %385 = vmatpush2.msra.mxu0 0.0
    %386 = vmatprep.subr.mxu0 0.0
    %387 = vmatpush2.msra.mxu0 0.0
    %388 = vmatprep.subr.mxu0 0.0
    %389 = vmatpush2.msra.mxu0 0.0
    %390 = vmatprep.subr.mxu0 0.0
    %391 = vmatpush2.msra.mxu0 0.0
    %392 = vmatprep.subr.mxu0 0.0
    %393 = vmatpush2.msra.mxu0 0.0
    %394 = vmatprep.subr.mxu0 0.0
    %395 = vmatpush2.msra.mxu0 0.0
    %396 = vmatprep.subr.mxu0 0.0
    %397 = vmatpush2.msra.mxu0 0.0
    %398 = vmatprep.subr.mxu0 %v187
    %399 = vmatpush2.msra.mxu0 %v186
    %400 = vmatprep.subr.mxu0 %v184
    %401 = vmatpush2.msra.mxu0 %v183
    %402 = vmatprep.subr.mxu0 %v181
    %403 = vmatpush2.msra.mxu0 %v180
    %404 = vmatprep.subr.mxu0 %v178
    %405 = vmatpush2.msra.mxu0 %v177
    %406 = vmatprep.mubr.f32.mxu0 %v334
    %407 = vmatmul.mubr.f32.gmra.mxu0 %v283
    %v408 = vpop.f32.mrf.mxu0
    %v409 = vadd.f32 0.0, %v408
    %v410 = vpop.f32.mrf.mxu0
    %v411 = vadd.f32 0.0, %v410
    %412 = vmatprep.mubr.f32.mxu0 %v336
    %413 = vmatmul.mubr.f32.gmra.mxu0 %v301
    %v414 = vpop.f32.mrf.mxu0
    %v415 = vadd.f32 0.0, %v414
    %v416 = vpop.f32.mrf.mxu0
    %v417 = vadd.f32 0.0, %v416
    %418 = vmatprep.mubr.f32.mxu0 %v338
    %419 = vmatmul.mubr.f32.gmra.mxu0 %v319
    %v420 = vpop.f32.mrf.mxu0
    %v421 = vadd.f32 0.0, %v420
    %v422 = vpop.f32.mrf.mxu0
    %v423 = vadd.f32 0.0, %v422
    %424 = vmatprep.mubr.f32.mxu0 %v340
    %425 = vmatmul.mubr.f32.gmra.mxu0 %v328
    %v426 = vpop.f32.mrf.mxu0
    %v427 = vadd.f32 0.0, %v426
    %v428 = vpop.f32.mrf.mxu0
    %v429 = vadd.f32 0.0, %v428
    %430 = vdwg.mxu0
    %431 = vmatprep.subr.mxu0 0.0
    %432 = vmatpush1.msra.mxu0 %v176
    %433 = vmatprep.subr.mxu0 0.0
    %434 = vmatpush1.msra.mxu0 %v173
    %435 = vmatprep.subr.mxu0 0.0
    %436 = vmatpush1.msra.mxu0 %v170
    %437 = vmatprep.subr.mxu0 0.0
    %438 = vmatpush1.msra.mxu0 %v167
    %439 = vmatprep.subr.mxu0 0.0
    %440 = vmatpush1.msra.mxu0 %v164
    %441 = vmatprep.subr.mxu0 0.0
    %442 = vmatpush1.msra.mxu0 %v161
    %443 = vmatprep.subr.mxu0 0.0
    %444 = vmatpush1.msra.mxu0 %v158
    %445 = vmatprep.subr.mxu0 0.0
    %446 = vmatpush1.msra.mxu0 %v155
    %447 = vmatprep.subr.mxu0 0.0
    %448 = vmatpush1.msra.mxu0 %v152
    %449 = vmatprep.subr.mxu0 0.0
    %450 = vmatpush1.msra.mxu0 %v149
    %451 = vmatprep.subr.mxu0 0.0
    %452 = vmatpush1.msra.mxu0 %v146
    %453 = vmatprep.subr.mxu0 0.0
    %454 = vmatpush1.msra.mxu0 %v143
    %455 = vmatprep.subr.mxu0 0.0
    %456 = vmatpush1.msra.mxu0 %v140
    %457 = vmatprep.subr.mxu0 0.0
    %458 = vmatpush1.msra.mxu0 %v137
    %459 = vmatprep.subr.mxu0 0.0
    %460 = vmatpush1.msra.mxu0 %v134
    %461 = vmatprep.subr.mxu0 0.0
    %462 = vmatpush1.msra.mxu0 %v131
    %463 = vmatprep.subr.mxu0 0.0
    %464 = vmatpush2.msra.mxu0 0.0
    %465 = vmatprep.subr.mxu0 0.0
    %466 = vmatpush2.msra.mxu0 0.0
    %467 = vmatprep.subr.mxu0 0.0
    %468 = vmatpush2.msra.mxu0 0.0
    %469 = vmatprep.subr.mxu0 0.0
    %470 = vmatpush2.msra.mxu0 0.0
    %471 = vmatprep.subr.mxu0 0.0
    %472 = vmatpush2.msra.mxu0 0.0
    %473 = vmatprep.subr.mxu0 0.0
    %474 = vmatpush2.msra.mxu0 0.0
    %475 = vmatprep.subr.mxu0 0.0
    %476 = vmatpush2.msra.mxu0 0.0
    %477 = vmatprep.subr.mxu0 0.0
    %478 = vmatpush2.msra.mxu0 0.0
    %479 = vmatprep.subr.mxu0 0.0
    %480 = vmatpush2.msra.mxu0 0.0
    %481 = vmatprep.subr.mxu0 0.0
    %482 = vmatpush2.msra.mxu0 0.0
    %483 = vmatprep.subr.mxu0 0.0
    %484 = vmatpush2.msra.mxu0 0.0
    %485 = vmatprep.subr.mxu0 0.0
    %486 = vmatpush2.msra.mxu0 0.0
    %487 = vmatprep.subr.mxu0 0.0
    %488 = vmatpush2.msra.mxu0 %v188
    %489 = vmatprep.subr.mxu0 0.0
    %490 = vmatpush2.msra.mxu0 %v185
    %491 = vmatprep.subr.mxu0 0.0
    %492 = vmatpush2.msra.mxu0 %v182
    %493 = vmatprep.subr.mxu0 0.0
    %494 = vmatpush2.msra.mxu0 %v179
    %495 = vmatprep.mubr.f32.mxu0 %v334
    %496 = vmatmul.mubr.f32.gmra.mxu0 %v283
    %v497 = vpop.f32.mrf.mxu0
    %v498 = vadd.f32 0.0, %v497
    %v499 = vpop.f32.mrf.mxu0
    %500 = vmatprep.mubr.f32.mxu0 %v336
    %501 = vmatmul.mubr.f32.gmra.mxu0 %v301
    %v502 = vpop.f32.mrf.mxu0
    %v503 = vadd.f32 0.0, %v502
    %v504 = vpop.f32.mrf.mxu0
    %505 = vmatprep.mubr.f32.mxu0 %v338
    %506 = vmatmul.mubr.f32.gmra.mxu0 %v319
    %v507 = vpop.f32.mrf.mxu0
    %v508 = vadd.f32 0.0, %v507
    %v509 = vpop.f32.mrf.mxu0
    %510 = vmatprep.mubr.f32.mxu0 %v340
    %511 = vmatmul.mubr.f32.gmra.mxu0 %v328
    %v512 = vpop.f32.mrf.mxu0
    %v513 = vadd.f32 0.0, %v512
    %v514 = vpop.f32.mrf.mxu0
    %515 = vdwg.mxu0
    %v528 = vcombine.low %v409, %v411
    %v529 = vcombine.high %v409, %v411
    %v530 = vcombine.high %v498, %v498
    %v532 = vunpack.c.l.s4 1983009808
    %v533 = vunpack.c.0.s8 %v532
    %v534 = vlaneseq
    %v535 = vshrl.u32 %v534, 7
    %v536 = vsub.s32 %v533, %v535
    %v537 = vrot.slane %v528, %v536
    %v539 = vunpack.c.l.s4 1983009808
    %v540 = vunpack.c.0.s8 %v539
    %v541 = vlaneseq
    %v542 = vshrl.u32 %v541, 7
    %v543 = vsub.s32 %v540, %v542
    %v544 = vrot.slane %v529, %v543
    %v546 = vunpack.c.l.s4 1983009808
    %v547 = vunpack.c.0.s8 %v546
    %v548 = vlaneseq
    %v549 = vshrl.u32 %v548, 7
    %v550 = vsub.s32 %v547, %v549
    %v551 = vrot.slane %v498, %v550
    %v553 = vunpack.c.l.s4 1983009808
    %v554 = vunpack.c.0.s8 %v553
    %v555 = vlaneseq
    %v556 = vshrl.u32 %v555, 7
    %v557 = vsub.s32 %v554, %v556
    %v558 = vrot.slane %v530, %v557
    %v559 = vcombine.low %v537, %v551
    %v560 = vcombine.high %v537, %v551
    %v561 = vcombine.low %v544, %v558
    %v562 = vcombine.high %v544, %v558
    %v563 = vcombine.low %v415, %v417
    %v564 = vcombine.high %v415, %v417
    %v565 = vcombine.high %v503, %v503
    %v567 = vunpack.c.l.s4 1983009808
    %v568 = vunpack.c.0.s8 %v567
    %v569 = vlaneseq
    %v570 = vshrl.u32 %v569, 7
    %v571 = vsub.s32 %v568, %v570
    %v572 = vrot.slane %v563, %v571
    %v574 = vunpack.c.l.s4 1983009808
    %v575 = vunpack.c.0.s8 %v574
    %v576 = vlaneseq
    %v577 = vshrl.u32 %v576, 7
    %v578 = vsub.s32 %v575, %v577
    %v579 = vrot.slane %v564, %v578
    %v581 = vunpack.c.l.s4 1983009808
    %v582 = vunpack.c.0.s8 %v581
    %v583 = vlaneseq
    %v584 = vshrl.u32 %v583, 7
    %v585 = vsub.s32 %v582, %v584
    %v586 = vrot.slane %v503, %v585
    %v588 = vunpack.c.l.s4 1983009808
    %v589 = vunpack.c.0.s8 %v588
    %v590 = vlaneseq
    %v591 = vshrl.u32 %v590, 7
    %v592 = vsub.s32 %v589, %v591
    %v593 = vrot.slane %v565, %v592
    %v594 = vcombine.low %v572, %v586
    %v595 = vcombine.high %v572, %v586
    %v596 = vcombine.low %v579, %v593
    %v597 = vcombine.high %v579, %v593
    %v598 = vcombine.low %v421, %v423
    %v599 = vcombine.high %v421, %v423
    %v600 = vcombine.high %v508, %v508
    %v602 = vunpack.c.l.s4 1983009808
    %v603 = vunpack.c.0.s8 %v602
    %v604 = vlaneseq
    %v605 = vshrl.u32 %v604, 7
    %v606 = vsub.s32 %v603, %v605
    %v607 = vrot.slane %v598, %v606
    %v609 = vunpack.c.l.s4 1983009808
    %v610 = vunpack.c.0.s8 %v609
    %v611 = vlaneseq
    %v612 = vshrl.u32 %v611, 7
    %v613 = vsub.s32 %v610, %v612
    %v614 = vrot.slane %v599, %v613
    %v616 = vunpack.c.l.s4 1983009808
    %v617 = vunpack.c.0.s8 %v616
    %v618 = vlaneseq
    %v619 = vshrl.u32 %v618, 7
    %v620 = vsub.s32 %v617, %v619
    %v621 = vrot.slane %v508, %v620
    %v623 = vunpack.c.l.s4 1983009808
    %v624 = vunpack.c.0.s8 %v623
    %v625 = vlaneseq
    %v626 = vshrl.u32 %v625, 7
    %v627 = vsub.s32 %v624, %v626
    %v628 = vrot.slane %v600, %v627
    %v629 = vcombine.low %v607, %v621
    %v630 = vcombine.high %v607, %v621
    %v631 = vcombine.low %v614, %v628
    %v632 = vcombine.high %v614, %v628
    %v633 = vcombine.low %v427, %v429
    %v635 = vunpack.c.l.s4 1983009808
    %v636 = vunpack.c.0.s8 %v635
    %v637 = vlaneseq
    %v638 = vshrl.u32 %v637, 7
    %v639 = vsub.s32 %v636, %v638
    %v640 = vrot.slane %v633, %v639
    %v642 = vunpack.c.l.s4 1983009808
    %v643 = vunpack.c.0.s8 %v642
    %v644 = vlaneseq
    %v645 = vshrl.u32 %v644, 7
    %v646 = vsub.s32 %v643, %v645
    %v647 = vrot.slane %v513, %v646
    %v648 = vcombine.low %v640, %v647
    %v649 = vcombine.high %v640, %v647
    %v650 = vcombine.low %v559, %v560
    %v651 = vcombine.low %v561, %v562
    %v653 = vunpack.c.l.s4 1983009808
    %v654 = vunpack.c.0.s8 %v653
    %v655 = vlaneseq
    %v656 = vshrl.u32 %v655, 7
    %v657 = vsub.s32 %v654, %v656
    %v658 = vrot.slane %v650, %v657
    %v660 = vunpack.c.l.s4 1983009808
    %v661 = vunpack.c.0.s8 %v660
    %v662 = vlaneseq
    %v663 = vshrl.u32 %v662, 7
    %v664 = vsub.s32 %v661, %v663
    %v665 = vrot.slane %v651, %v664
    %v666 = vcombine.low %v658, %v665
    %v667 = vcombine.low %v594, %v595
    %v669 = vunpack.c.l.s4 1983009808
    %v670 = vunpack.c.0.s8 %v669
    %v671 = vlaneseq
    %v672 = vshrl.u32 %v671, 7
    %v673 = vsub.s32 %v670, %v672
    %v674 = vrot.slane %v667, %v673
    %v676 = vunpack.c.l.s4 1983009808
    %v677 = vunpack.c.0.s8 %v676
    %v678 = vlaneseq
    %v679 = vshrl.u32 %v678, 7
    %v680 = vsub.s32 %v677, %v679
    %v681 = vrot.slane %v596, %v680
    %v682 = vcombine.low %v674, %v681
    %v683 = vcombine.low %v597, %v629
    %v684 = vcombine.low %v630, %v631
    %v686 = vunpack.c.l.s4 1983009808
    %v687 = vunpack.c.0.s8 %v686
    %v688 = vlaneseq
    %v689 = vshrl.u32 %v688, 7
    %v690 = vsub.s32 %v687, %v689
    %v691 = vrot.slane %v683, %v690
    %v693 = vunpack.c.l.s4 1983009808
    %v694 = vunpack.c.0.s8 %v693
    %v695 = vlaneseq
    %v696 = vshrl.u32 %v695, 7
    %v697 = vsub.s32 %v694, %v696
    %v698 = vrot.slane %v684, %v697
    %v699 = vcombine.low %v691, %v698
    %v700 = vcombine.low %v632, %v648
    %v702 = vunpack.c.l.s4 1983009808
    %v703 = vunpack.c.0.s8 %v702
    %v704 = vlaneseq
    %v705 = vshrl.u32 %v704, 7
    %v706 = vsub.s32 %v703, %v705
    %v707 = vrot.slane %v700, %v706
    %v709 = vunpack.c.l.s4 1983009808
    %v710 = vunpack.c.0.s8 %v709
    %v711 = vlaneseq
    %v712 = vshrl.u32 %v711, 7
    %v713 = vsub.s32 %v710, %v712
    %v714 = vrot.slane %v649, %v713
    %v715 = vcombine.low %v707, %v714
    %vm720 = vcmask 1045504
    %v721 = vsel %vm720, %v682, -inf
    %v722 = vmax.f32 %v666, %v721
    %v723 = vrot.slane %v722, 4
    %v724 = vmax.f32 %v722, %v723
    %v725 = vrot.slane %v724, 2
    %v726 = vmax.f32 %v724, %v725
    %v727 = vrot.slane %v726, 1
    %v728 = vmax.f32 %v726, %v727
    %v729 = vsel %vm720, %v715, -inf
    %v730 = vmax.f32 %v699, %v729
    %v731 = vrot.slane %v730, 4
    %v732 = vmax.f32 %v730, %v731
    %v733 = vrot.slane %v732, 2
    %v734 = vmax.f32 %v732, %v733
    %v735 = vrot.slane %v734, 1
    %v736 = vmax.f32 %v734, %v735
    %v737 = vcombine.high %v658, %v665
    %v738 = vcombine.high %v674, %v681
    %v739 = vcombine.high %v691, %v698
    %v740 = vcombine.high %v707, %v714
    %vm745 = vcmask 1044480
    %v746 = vsel %vm745, %v738, -inf
    %v747 = vmax.f32 %v737, %v746
    %v748 = vrot.slane %v747, 4
    %v749 = vmax.f32 %v747, %v748
    %v750 = vrot.slane %v749, 2
    %v751 = vmax.f32 %v749, %v750
    %v752 = vrot.slane %v751, 1
    %v753 = vmax.f32 %v751, %v752
    %v754 = vsel %vm745, %v740, -inf
    %v755 = vmax.f32 %v739, %v754
    %v756 = vrot.slane %v755, 4
    %v757 = vmax.f32 %v755, %v756
    %v758 = vrot.slane %v757, 2
    %v759 = vmax.f32 %v757, %v758
    %v760 = vrot.slane %v759, 1
    %v761 = vmax.f32 %v759, %v760
    %v762 = vcombine.high %v559, %v560
    %v763 = vcombine.high %v561, %v562
    %v765 = vunpack.c.l.s4 1983009808
    %v766 = vunpack.c.0.s8 %v765
    %v767 = vlaneseq
    %v768 = vshrl.u32 %v767, 7
    %v769 = vsub.s32 %v766, %v768
    %v770 = vrot.slane %v762, %v769
    %v772 = vunpack.c.l.s4 1983009808
    %v773 = vunpack.c.0.s8 %v772
    %v774 = vlaneseq
    %v775 = vshrl.u32 %v774, 7
    %v776 = vsub.s32 %v773, %v775
    %v777 = vrot.slane %v763, %v776
    %v778 = vcombine.low %v770, %v777
    %v779 = vcombine.high %v594, %v595
    %v781 = vunpack.c.l.s4 1983009808
    %v782 = vunpack.c.0.s8 %v781
    %v783 = vlaneseq
    %v784 = vshrl.u32 %v783, 7
    %v785 = vsub.s32 %v782, %v784
    %v786 = vrot.slane %v779, %v785
    %v787 = vcombine.high %v597, %v629
    %v788 = vcombine.high %v630, %v631
    %v790 = vunpack.c.l.s4 1983009808
    %v791 = vunpack.c.0.s8 %v790
    %v792 = vlaneseq
    %v793 = vshrl.u32 %v792, 7
    %v794 = vsub.s32 %v791, %v793
    %v795 = vrot.slane %v787, %v794
    %v797 = vunpack.c.l.s4 1983009808
    %v798 = vunpack.c.0.s8 %v797
    %v799 = vlaneseq
    %v800 = vshrl.u32 %v799, 7
    %v801 = vsub.s32 %v798, %v800
    %v802 = vrot.slane %v788, %v801
    %v803 = vcombine.low %v795, %v802
    %v804 = vcombine.high %v632, %v648
    %v806 = vunpack.c.l.s4 1983009808
    %v807 = vunpack.c.0.s8 %v806
    %v808 = vlaneseq
    %v809 = vshrl.u32 %v808, 7
    %v810 = vsub.s32 %v807, %v809
    %v811 = vrot.slane %v804, %v810
    %vm816 = vcmask 1043456
    %v817 = vsel %vm816, %v786, -inf
    %v818 = vmax.f32 %v778, %v817
    %v819 = vrot.slane %v818, 4
    %v820 = vmax.f32 %v818, %v819
    %v821 = vrot.slane %v820, 2
    %v822 = vmax.f32 %v820, %v821
    %v823 = vrot.slane %v822, 1
    %v824 = vmax.f32 %v822, %v823
    %v825 = vsel %vm816, %v811, -inf
    %v826 = vmax.f32 %v803, %v825
    %v827 = vrot.slane %v826, 4
    %v828 = vmax.f32 %v826, %v827
    %v829 = vrot.slane %v828, 2
    %v830 = vmax.f32 %v828, %v829
    %v831 = vrot.slane %v830, 1
    %v832 = vmax.f32 %v830, %v831
    %v833 = vld [vmem:[%s2] sm:$0x1]
    %v835 = vlaneseq
    %v836 = vshrl.u32 %v835, 7
    %v837 = vsub.s32 0, %v836
    %v838 = vrot.slane %v833, %v837
    %v840 = vadd.f32 %v728, %v838
    %v841 = vadd.f32 %v736, %v838
    %v842 = vmax.f32 %v840, 0.0
    %v843 = vmax.f32 %v841, 0.0
    %v847 = vunpack.c.l.s4 1983009808
    %v848 = vunpack.c.0.s8 %v847
    %v849 = vlaneseq
    %v850 = vshrl.u32 %v849, 7
    %v851 = vsub.s32 %v848, %v850
    %v852 = vrot.slane %v842, %v851
    %v854 = vunpack.c.l.s4 1983009808
    %v855 = vunpack.c.0.s8 %v854
    %v856 = vlaneseq
    %v857 = vshrl.u32 %v856, 7
    %v858 = vsub.s32 %v855, %v857
    %v859 = vrot.slane %v843, %v858
    %vm860 = vcmask 1044484
    %v861 = vsel %vm860, %v852, %v852
    %vm862 = vcmask 1046534
    %v863 = vsel %vm862, %v852, %v861
    %v864 = vrot.slane %v859, 7
    %vm865 = vcmask 1041409
    %v866 = vsel %vm865, %v864, %v863
    %vm867 = vcmask 1043459
    %v868 = vsel %vm867, %v864, %v866
    %vm869 = vcmask 1045509
    %v870 = vsel %vm869, %v864, %v868
    %vm871 = vcmask 1047559
    %v872 = vsel %vm871, %v864, %v870
    %vm874 = vcmask 812032
    %875 = vst.msk [vmem:[#allocation6] sm:$0x3] %vm874, %v872
    %v876 = vld [vmem:[%s2 + $0x1] sm:$0x1]
    %v878 = vlaneseq
    %v879 = vshrl.u32 %v878, 7
    %v880 = vsub.s32 0, %v879
    %v881 = vrot.slane %v876, %v880
    %v883 = vadd.f32 %v753, %v881
    %v884 = vadd.f32 %v761, %v881
    %v885 = vmax.f32 %v883, 0.0
    %v886 = vmax.f32 %v884, 0.0
    %v890 = vunpack.c.l.s4 1983009808
    %v891 = vunpack.c.0.s8 %v890
    %v892 = vlaneseq
    %v893 = vshrl.u32 %v892, 7
    %v894 = vsub.s32 %v891, %v893
    %v895 = vrot.slane %v885, %v894
    %v897 = vunpack.c.l.s4 1983009808
    %v898 = vunpack.c.0.s8 %v897
    %v899 = vlaneseq
    %v900 = vshrl.u32 %v899, 7
    %v901 = vsub.s32 %v898, %v900
    %v902 = vrot.slane %v886, %v901
    %v903 = vsel %vm860, %v895, %v895
    %v904 = vsel %vm862, %v895, %v903
    %v905 = vrot.slane %v902, 7
    %v906 = vsel %vm865, %v905, %v904
    %v907 = vsel %vm867, %v905, %v906
    %v908 = vsel %vm869, %v905, %v907
    %v909 = vsel %vm871, %v905, %v908
    %910 = vrot.lane.b32.xlu0 %v909, 100
    %v911 = vpop.permute.xlu0 %910
    %v912 = vrot.slane %v911, 6
    %vm913 = vcmask 818176
    %v914 = vsel %vm913, %v912, %v911
    %vm916 = vcmask 1042208
    %vm917 = vcmask 584706
    %vm918 = vmor %vm917, %vm916
    %919 = vst.msk [vmem:[#allocation6] sm:$0xf] %vm918, %v914
    %v920 = vld [vmem:[%s2 + $0x2] sm:$0x1]
    %v922 = vlaneseq
    %v923 = vshrl.u32 %v922, 7
    %v924 = vsub.s32 0, %v923
    %v925 = vrot.slane %v920, %v924
    %v927 = vadd.f32 %v824, %v925
    %v928 = vadd.f32 %v832, %v925
    %v929 = vmax.f32 %v927, 0.0
    %v930 = vmax.f32 %v928, 0.0
    %v934 = vunpack.c.l.s4 1983009808
    %v935 = vunpack.c.0.s8 %v934
    %v936 = vlaneseq
    %v937 = vshrl.u32 %v936, 7
    %v938 = vsub.s32 %v935, %v937
    %v939 = vrot.slane %v929, %v938
    %v941 = vunpack.c.l.s4 1983009808
    %v942 = vunpack.c.0.s8 %v941
    %v943 = vlaneseq
    %v944 = vshrl.u32 %v943, 7
    %v945 = vsub.s32 %v942, %v944
    %v946 = vrot.slane %v930, %v945
    %v947 = vsel %vm860, %v939, %v939
    %v948 = vsel %vm862, %v939, %v947
    %v949 = vrot.slane %v946, 7
    %v950 = vsel %vm865, %v949, %v948
    %v951 = vsel %vm867, %v949, %v950
    %v952 = vsel %vm869, %v949, %v951
    %v953 = vsel %vm871, %v949, %v952
    %954 = vrot.lane.b32.xlu0 %v953, 72
    %v955 = vpop.permute.xlu0 %954
    %v956 = vrot.slane %v955, 6
    %vm957 = vcmask 588800
    %v958 = vsel %vm957, %v956, %v955
    %vm960 = vcmask 1041984
    %vm961 = vcmask 355330
    %vm962 = vmor %vm961, %vm960
    %963 = vst.msk [vmem:[#allocation6 + $0x2] sm:$0xf] %vm962, %v958
    // Predicated region
    $region18: #{cnn_text_layer.1} parent=1 // pred_check
      _
    $region19: #{cnn_text_layer.1} parent=1 // pred_check_branch
      %965 = sbr.rel (0) target = $region21
    $region20: #{cnn_text_layer.1} parent=1 // pred_region
      %s967 = ssub.s32 96, 96
      %968 = vsyncadd [#allocation5], %s967
      %s970 = sshll.u32 [#allocation6], 4
      %s971 = int_to_ptr.vmem [resolvable:$true] %s970
      %973 = dma.vmem_to_hbm [thread:$0]  %s971, 96, %s3, [#allocation5]
    $region21: #{cnn_text_layer.1} parent=1 // pred_fallthru
      _
    // Predicated region
    $region22: #{cnn_text_layer.1} parent=1 // pred_check
      _
    $region23: #{cnn_text_layer.1} parent=1 // pred_check_branch
      %975 = sbr.rel (0) target = $region25
    $region24: #{cnn_text_layer.1} parent=1 // pred_region
      %976 = dma.done [#allocation5], 96
    $region25: #{cnn_text_layer.1} parent=1 // pred_fallthru
      _
    %977 = vsyncpa [#allocation4], 1
    %978 = vsyncpa [#allocation5], 1

</llo_original>
